<compile_context>
chip_gen: v6e
topology: v6e:2x2x1
jax: 0.10.0
libtpu: 0.0.40
codegen_flags: <defaults>
</compile_context>

<pallas_src>
import functools

import jax
import jax.numpy as jnp
from jax.experimental import pallas as pl
from jax.experimental.pallas import tpu as pltpu


# ------------------------------ Pallas kernels ------------------------------
def _fwa_add_kernel(emb_ref, w_ref, b_ref, x_ref, o_ref):
    # emb_ref: (1, Din)   w_ref: (C, Din)   b_ref: (C, 1)
    # x_ref / o_ref: (C, HW)   (batch dim squeezed by BlockSpec)
    noise = jnp.sum(w_ref[...] * emb_ref[...], axis=1, keepdims=True)  # (C, 1)
    noise = noise + b_ref[...]
    o_ref[...] = (x_ref[...] + noise).astype(o_ref.dtype)


def _fwa_affine_kernel(emb_ref, w_ref, b_ref, x_ref, o_ref):
    # emb_ref: (1, Din)   w_ref: (2C, Din)   b_ref: (2C, 1)
    # x_ref / o_ref: (C, HW)
    nf = jnp.sum(w_ref[...] * emb_ref[...], axis=1, keepdims=True)     # (2C, 1)
    nf = nf + b_ref[...]
    C = x_ref.shape[0]
    gamma = nf[:C]                                                     # (C, 1)
    beta = nf[C:]                                                      # (C, 1)
    o_ref[...] = ((1.0 + gamma) * x_ref[...] + beta).astype(o_ref.dtype)


# -------------------------------- wrapper -----------------------------------
def feature_wise_affine(x, noise_embed, w, b, *, use_affine_level=False):
    """FeatureWiseAffine forward.

    x:           (B, C, H, W)  NCHW activations
    noise_embed: (B, Din)      noise-level embedding
    w, b:        Linear params, w: (C*(1+affine), Din), b: (C*(1+affine),)
    """
    B, C, H, W = x.shape
    HW = H * W
    Din = noise_embed.shape[-1]
    Cout = w.shape[0]
    assert Cout == C * (2 if use_affine_level else 1)

    x_r = x.reshape(B, C, HW)
    emb3 = noise_embed.reshape(B, 1, Din).astype(jnp.float32)
    w_f = w.astype(jnp.float32)
    b_col = b.reshape(Cout, 1).astype(jnp.float32)

    kernel = _fwa_affine_kernel if use_affine_level else _fwa_add_kernel
    out = pl.pallas_call(
        kernel,
        out_shape=jax.ShapeDtypeStruct((B, C, HW), x.dtype),
        grid=(B,),
        in_specs=[
            # noise embedding row for this batch element: (1, Din)
            pl.BlockSpec((None, 1, Din), lambda i: (i, 0, 0)),
            # full Linear weight / bias, resident every step
            pl.BlockSpec((Cout, Din), lambda i: (0, 0)),
            pl.BlockSpec((Cout, 1), lambda i: (0, 0)),
            # activation slab for this batch element: (C, HW), lane dim = HW
            pl.BlockSpec((None, C, HW), lambda i: (i, 0, 0)),
        ],
        out_specs=pl.BlockSpec((None, C, HW), lambda i: (i, 0, 0)),
        compiler_params=pltpu.CompilerParams(
            dimension_semantics=("parallel",)),
    )(emb3, w_f, b_col, x_r)
    return out.reshape(B, C, H, W)


# ------------------------------ JAX reference --------------------------------
def feature_wise_affine_ref(x, noise_embed, w, b, *, use_affine_level=False):
    B = x.shape[0]
    nf = noise_embed @ w.T + b[None, :]
    nf = nf.reshape(B, -1, 1, 1)
    if use_affine_level:
        gamma, beta = jnp.split(nf, 2, axis=1)
        return (1.0 + gamma) * x + beta
    return x + nf


# ----------------------------------- main ------------------------------------
if __name__ == "__main__":
    B, C, H, W = 2, 4, 16, 16     # x: (2, 4, 16, 16)
    DIN = 32                      # noise-embedding width

    key = jax.random.PRNGKey(0)
    kx, ke, kw1, kw2 = jax.random.split(key, 4)
    x = jax.random.normal(kx, (B, C, H, W), jnp.float32)
    noise_embed = jax.random.normal(ke, (B, DIN), jnp.float32)

    # use_affine_level=False (module default): Linear(Din -> C)
    w_add = (1.0 / jnp.sqrt(DIN)) * jax.random.normal(kw1, (C, DIN), jnp.float32)
    b_add = jnp.zeros((C,), jnp.float32)

    # use_affine_level=True: Linear(Din -> 2C), chunked into (gamma, beta)
    w_aff = (1.0 / jnp.sqrt(DIN)) * jax.random.normal(kw2, (2 * C, DIN), jnp.float32)
    b_aff = jnp.zeros((2 * C,), jnp.float32)

    fwd = jax.jit(functools.partial(feature_wise_affine, use_affine_level=False))
    fwd_aff = jax.jit(functools.partial(feature_wise_affine, use_affine_level=True))

    out_add = jax.block_until_ready(fwd(x, noise_embed, w_add, b_add))
    out_aff = jax.block_until_ready(fwd_aff(x, noise_embed, w_aff, b_aff))

    ref_add = feature_wise_affine_ref(x, noise_embed, w_add, b_add,
                                      use_affine_level=False)
    ref_aff = feature_wise_affine_ref(x, noise_embed, w_aff, b_aff,
                                      use_affine_level=True)

    assert out_add.shape == (B, C, H, W), out_add.shape
    assert out_aff.shape == (B, C, H, W), out_aff.shape
    assert bool(jnp.all(jnp.isfinite(out_add)))
    assert bool(jnp.all(jnp.isfinite(out_aff)))
    assert bool(jnp.allclose(out_add, ref_add, rtol=1e-4, atol=1e-4))
    assert bool(jnp.allclose(out_aff, ref_aff, rtol=1e-4, atol=1e-4))

    print("KERNEL_OK")
</pallas_src>

<mosaic_0001>
module attributes {stable_mosaic.version = 11 : i64} {
  func.func @_fwa_add_kernel(%arg0: i32, %arg1: memref<1x1x32xf32, #tpu.memory_space<vmem>>, %arg2: memref<4x32xf32, #tpu.memory_space<vmem>>, %arg3: memref<4x1xf32, #tpu.memory_space<vmem>>, %arg4: memref<1x4x256xf32, #tpu.memory_space<vmem>>, %arg5: memref<1x4x256xf32, #tpu.memory_space<vmem>>) attributes {dimension_semantics = [#tpu.dimension_semantics<parallel>], iteration_bounds = array<i64: 2>, scalar_prefetch = 0 : i64, scratch_operands = 0 : i64, tpu.core_type = #tpu.core_type<tc>, window_params = [{transform_indices = @transform_0, window_bounds = array<i64: 1, 1, 32>}, {pipeline_mode = #tpu.pipeline_mode<synchronous>, transform_indices = @transform_1, window_bounds = array<i64: 4, 32>}, {pipeline_mode = #tpu.pipeline_mode<synchronous>, transform_indices = @transform_2, window_bounds = array<i64: 4, 1>}, {transform_indices = @transform_3, window_bounds = array<i64: 1, 4, 256>}, {transform_indices = @transform_4, window_bounds = array<i64: 1, 4, 256>}]} {
    %c0 = arith.constant 0 : index
    %c0_0 = arith.constant 0 : index
    %0 = vector.load %arg2[%c0, %c0_0] : memref<4x32xf32, #tpu.memory_space<vmem>>, vector<4x32xf32>
    %c0_1 = arith.constant 0 : index
    %c0_2 = arith.constant 0 : index
    %c0_3 = arith.constant 0 : index
    %1 = vector.load %arg1[%c0_1, %c0_2, %c0_3] : memref<1x1x32xf32, #tpu.memory_space<vmem>>, vector<1x1x32xf32>
    %2 = vector.shape_cast %1 : vector<1x1x32xf32> to vector<1x32xf32>
    %3 = vector.broadcast %2 : vector<1x32xf32> to vector<4x32xf32>
    %4 = arith.mulf %0, %3 : vector<4x32xf32>
    %cst = arith.constant dense<0.000000e+00> : vector<4xf32>
    %5 = vector.multi_reduction <add>, %4, %cst [1] : vector<4x32xf32> to vector<4xf32>
    %6 = vector.shape_cast %5 : vector<4xf32> to vector<4x1xf32>
    %c0_4 = arith.constant 0 : index
    %c0_5 = arith.constant 0 : index
    %7 = vector.load %arg3[%c0_4, %c0_5] : memref<4x1xf32, #tpu.memory_space<vmem>>, vector<4x1xf32>
    %8 = arith.addf %6, %7 : vector<4x1xf32>
    %c0_6 = arith.constant 0 : index
    %c0_7 = arith.constant 0 : index
    %c0_8 = arith.constant 0 : index
    %9 = vector.load %arg4[%c0_6, %c0_7, %c0_8] : memref<1x4x256xf32, #tpu.memory_space<vmem>>, vector<1x4x256xf32>
    %10 = vector.shape_cast %9 : vector<1x4x256xf32> to vector<4x256xf32>
    %11 = vector.broadcast %8 : vector<4x1xf32> to vector<4x256xf32>
    %12 = arith.addf %10, %11 : vector<4x256xf32>
    %c0_9 = arith.constant 0 : index
    %c0_10 = arith.constant 0 : index
    %c0_11 = arith.constant 0 : index
    %13 = vector.load %arg5[%c0_9, %c0_10, %c0_11] : memref<1x4x256xf32, #tpu.memory_space<vmem>>, vector<1x4x256xf32>
    %14 = vector.shape_cast %13 : vector<1x4x256xf32> to vector<4x256xf32>
    %15 = vector.shape_cast %12 : vector<4x256xf32> to vector<1x4x256xf32>
    tpu.vector_store %arg5[%c0_9, %c0_10, %c0_11], %15 {strides = array<i32>} : memref<1x4x256xf32, #tpu.memory_space<vmem>>, vector<1x4x256xf32>,
    return
  }
  func.func @transform_0(%arg0: i32) -> (i32, i32, i32) {
    %c0_i32 = arith.constant 0 : i32
    %c0_i32_0 = arith.constant 0 : i32
    %c0_i32_1 = arith.constant 0 : i32
    return %arg0, %c0_i32, %c0_i32_0 : i32, i32, i32
  }
  func.func @transform_1(%arg0: i32) -> (i32, i32) {
    %c0_i32 = arith.constant 0 : i32
    %c0_i32_0 = arith.constant 0 : i32
    %c0_i32_1 = arith.constant 0 : i32
    return %c0_i32, %c0_i32_0 : i32, i32
  }
  func.func @transform_2(%arg0: i32) -> (i32, i32) {
    %c0_i32 = arith.constant 0 : i32
    %c0_i32_0 = arith.constant 0 : i32
    %c0_i32_1 = arith.constant 0 : i32
    return %c0_i32, %c0_i32_0 : i32, i32
  }
  func.func @transform_3(%arg0: i32) -> (i32, i32, i32) {
    %c0_i32 = arith.constant 0 : i32
    %c0_i32_0 = arith.constant 0 : i32
    %c0_i32_1 = arith.constant 0 : i32
    return %arg0, %c0_i32, %c0_i32_0 : i32, i32, i32
  }
  func.func @transform_4(%arg0: i32) -> (i32, i32, i32) {
    %c0_i32 = arith.constant 0 : i32
    %c0_i32_0 = arith.constant 0 : i32
    %c0_i32_1 = arith.constant 0 : i32
    return %arg0, %c0_i32, %c0_i32_0 : i32, i32, i32
  }
}

</mosaic_0001>

<llo_original>
// kernel: feature_wise_affine.1
$region0: #{feature_wise_affine.1}
  #allocation0 [shape = 'u32[]', space=smem, size = 0x4, offset = 0x4, fixed_abs, tag = 'smem constant byte address 0x4 - core index']
  #allocation1 [shape = 'u32[144,128]{1,0:T(1,128)}', space=vmem, size = 0x12000, scoped, tag = 'internal scratch']
  %s0 = inlined_call_operand.vmem [shape: f32[2,1,32], index: 0, kind: input, shape index: {}]
  %s1 = inlined_call_operand.vmem [shape: f32[4,32], index: 1, kind: input, shape index: {}]
  %s2 = inlined_call_operand.vmem [shape: f32[4,1], index: 2, kind: input, shape index: {}]
  %s3 = inlined_call_operand.vmem [shape: f32[2,4,256], index: 3, kind: input, shape index: {}]
  %s4 = inlined_call_operand.vmem [shape: f32[2,4,256], index: 4, kind: output, shape index: {}]
  %s5 = sld [smem:[#allocation0]]
  $region49: #{feature_wise_affine.1} parent=0
    _
  %s7 = ssub.s32 1, %s5
  %s8 = scalar_select 0, %s7, %s5
  loop: start=0, step=1, limit=4
  $region2: #{feature_wise_affine.1} parent=0 // loop_pre_header
    _
  $region3: #{feature_wise_affine.1} parent=0 // loop_header
    %s10 = sphi 0, %s14
    %p11 = scmp.ge.s32.totalorder %s10, 4
    %s20 = sphi 0, %s22
    %s23 = sphi 0, %s20
    %s24 = sphi 0, %s23
    %s40 = sphi 0, %s24
    %s44 = sphi 0, %s44
    %s46 = sphi 0, %s44
    %s47 = sphi 0, %s46
    %s61 = sphi 0, %s47
    %s65 = sphi 0, %s65
    %s67 = sphi 0, %s65
    %s68 = sphi 0, %s67
    %s82 = sphi 0, %s68
    %s88 = sphi 0, %s90
    %s91 = sphi 0, %s88
    %s92 = sphi 0, %s91
    %s108 = sphi 0, %s92
    %s114 = sphi 0, %s116
    %s117 = sphi 0, %s114
    %s118 = sphi 0, %s117
    %s134 = sphi 0, %s118
  $region4: #{feature_wise_affine.1} parent=0 // loop_header_branch
    %13 = sbr.rel (%p11) target = $region8
  $region5: #{feature_wise_affine.1} parent=0 // loop_body
    %s15 = ssub.s32 %s10, 1
    %s16 = ssub.s32 %s10, 2
    %s17 = sadd.s32 %s10, 1
    %s18 = ssub.s32 %s10, %s17
    %p19 = scmp.eq.s32.totalorder %s18, 0
    %s21 = sadd.s32 %s20, 1
    %s22 = scalar_select %p19, %s20, %s21
    %p25 = pneg %p19
    %p26 = scmp.eq.s32.totalorder %s10, 1
    %p27 = por %p25, %p26
    %p28 = scmp.ne.s32.totalorder %s20, %s23
    %p29 = scmp.eq.s32.totalorder %s10, 0
    %p30 = por %p28, %p29
    %p31 = scmp.ne.s32.totalorder %s20, %s23
    %p32 = scmp.eq.s32.totalorder %s15, 1
    %p33 = por %p31, %p32
    %p34 = scmp.ne.s32.totalorder %s23, %s24
    %p35 = scmp.eq.s32.totalorder %s15, 0
    %p36 = por %p34, %p35
    %p37 = scmp.ne.s32.totalorder %s23, %s24
    %p38 = scmp.eq.s32.totalorder %s16, 1
    %p39 = por %p37, %p38
    %p41 = scmp.ne.s32.totalorder %s24, %s40
    %p42 = scmp.eq.s32.totalorder %s16, 0
    %p43 = por %p41, %p42
    %s45 = sadd.s32 %s44, 1
    %p48 = scmp.eq.s32.totalorder %s10, 1
    %p49 = scmp.ne.s32.totalorder %s44, %s46
    %p50 = scmp.eq.s32.totalorder %s10, 0
    %p51 = por %p49, %p50
    %p52 = scmp.ne.s32.totalorder %s44, %s46
    %p53 = scmp.eq.s32.totalorder %s15, 1
    %p54 = por %p52, %p53
    %p55 = scmp.ne.s32.totalorder %s46, %s47
    %p56 = scmp.eq.s32.totalorder %s15, 0
    %p57 = por %p55, %p56
    %p58 = scmp.ne.s32.totalorder %s46, %s47
    %p59 = scmp.eq.s32.totalorder %s16, 1
    %p60 = por %p58, %p59
    %p62 = scmp.ne.s32.totalorder %s47, %s61
    %p63 = scmp.eq.s32.totalorder %s16, 0
    %p64 = por %p62, %p63
    %s66 = sadd.s32 %s65, 1
    %p69 = scmp.eq.s32.totalorder %s10, 1
    %p70 = scmp.ne.s32.totalorder %s65, %s67
    %p71 = scmp.eq.s32.totalorder %s10, 0
    %p72 = por %p70, %p71
    %p73 = scmp.ne.s32.totalorder %s65, %s67
    %p74 = scmp.eq.s32.totalorder %s15, 1
    %p75 = por %p73, %p74
    %p76 = scmp.ne.s32.totalorder %s67, %s68
    %p77 = scmp.eq.s32.totalorder %s15, 0
    %p78 = por %p76, %p77
    %p79 = scmp.ne.s32.totalorder %s67, %s68
    %p80 = scmp.eq.s32.totalorder %s16, 1
    %p81 = por %p79, %p80
    %p83 = scmp.ne.s32.totalorder %s68, %s82
    %p84 = scmp.eq.s32.totalorder %s16, 0
    %p85 = por %p83, %p84
    %s86 = ssub.s32 %s10, %s17
    %p87 = scmp.eq.s32.totalorder %s86, 0
    %s89 = sadd.s32 %s88, 1
    %s90 = scalar_select %p87, %s88, %s89
    %p93 = pneg %p87
    %p94 = scmp.eq.s32.totalorder %s10, 1
    %p95 = por %p93, %p94
    %p96 = scmp.ne.s32.totalorder %s88, %s91
    %p97 = scmp.eq.s32.totalorder %s10, 0
    %p98 = por %p96, %p97
    %p99 = scmp.ne.s32.totalorder %s88, %s91
    %p100 = scmp.eq.s32.totalorder %s15, 1
    %p101 = por %p99, %p100
    %p102 = scmp.ne.s32.totalorder %s91, %s92
    %p103 = scmp.eq.s32.totalorder %s15, 0
    %p104 = por %p102, %p103
    %p105 = scmp.ne.s32.totalorder %s91, %s92
    %p106 = scmp.eq.s32.totalorder %s16, 1
    %p107 = por %p105, %p106
    %p109 = scmp.ne.s32.totalorder %s92, %s108
    %p110 = scmp.eq.s32.totalorder %s16, 0
    %p111 = por %p109, %p110
    %s112 = ssub.s32 %s10, %s17
    %p113 = scmp.eq.s32.totalorder %s112, 0
    %s115 = sadd.s32 %s114, 1
    %s116 = scalar_select %p113, %s114, %s115
    %p119 = pneg %p113
    %p120 = scmp.eq.s32.totalorder %s10, 1
    %p121 = por %p119, %p120
    %p122 = scmp.ne.s32.totalorder %s114, %s117
    %p123 = scmp.eq.s32.totalorder %s10, 0
    %p124 = por %p122, %p123
    %p125 = scmp.ne.s32.totalorder %s114, %s117
    %p126 = scmp.eq.s32.totalorder %s15, 1
    %p127 = por %p125, %p126
    %p128 = scmp.ne.s32.totalorder %s117, %s118
    %p129 = scmp.eq.s32.totalorder %s15, 0
    %p130 = por %p128, %p129
    %p131 = scmp.ne.s32.totalorder %s117, %s118
    %p132 = scmp.eq.s32.totalorder %s16, 1
    %p133 = por %p131, %p132
    %p135 = scmp.ne.s32.totalorder %s118, %s134
    %p136 = scmp.eq.s32.totalorder %s16, 0
    %p137 = por %p135, %p136
    %p138 = scmp.le.s32.totalorder 1, %s10
    %p139 = scmp.lt.s32.totalorder %s10, 3
    %p140 = pnand %p138, %p139
    %p141 = pneg %p140
    // Predicated region
    $region9: #{feature_wise_affine.1} parent=5 // pred_check
      _
    $region10: #{feature_wise_affine.1} parent=5 // pred_check_branch
      %143 = sbr.rel (%p140) target = $region12
    $region11: #{feature_wise_affine.1} parent=5 // pred_region
      %s144 = ssub.s32 %s10, 1
      // Predicated region
      $region13: #{feature_wise_affine.1} parent=11 // pred_check
        %p145 = pneg %p57
      $region14: #{feature_wise_affine.1} parent=11 // pred_check_branch
        %147 = sbr.rel (%p145) target = $region16
      $region15: #{feature_wise_affine.1} parent=11 // pred_region
        _
      $region16: #{feature_wise_affine.1} parent=11 // pred_fallthru
        _
      // Predicated region
      $region17: #{feature_wise_affine.1} parent=11 // pred_check
        %p148 = pneg %p78
      $region18: #{feature_wise_affine.1} parent=11 // pred_check_branch
        %150 = sbr.rel (%p148) target = $region20
      $region19: #{feature_wise_affine.1} parent=11 // pred_region
        _
      $region20: #{feature_wise_affine.1} parent=11 // pred_fallthru
        _
    $region12: #{feature_wise_affine.1} parent=5 // pred_fallthru
      _
    %p151 = scmp.lt.s32.totalorder %s10, 2
    // Predicated region
    $region21: #{feature_wise_affine.1} parent=5 // pred_check
      %p152 = pneg %p151
    $region22: #{feature_wise_affine.1} parent=5 // pred_check_branch
      %154 = sbr.rel (%p152) target = $region24
    $region23: #{feature_wise_affine.1} parent=5 // pred_region
      // Predicated region
      $region25: #{feature_wise_affine.1} parent=23 // pred_check
        %p155 = pneg %p30
      $region26: #{feature_wise_affine.1} parent=23 // pred_check_branch
        %157 = sbr.rel (%p155) target = $region28
      $region27: #{feature_wise_affine.1} parent=23 // pred_region
        %p158 = scmp.lt.s32.totalorder %s10, 1
        %s159 = scalar_select %p158, %s10, 1
        %s160 = scalar_lea.vmem %s0, %s159
      $region28: #{feature_wise_affine.1} parent=23 // pred_fallthru
        _
      // Predicated region
      $region29: #{feature_wise_affine.1} parent=23 // pred_check
        %p161 = pneg %p98
      $region30: #{feature_wise_affine.1} parent=23 // pred_check_branch
        %163 = sbr.rel (%p161) target = $region32
      $region31: #{feature_wise_affine.1} parent=23 // pred_region
        %p164 = scmp.lt.s32.totalorder %s10, 1
        %s165 = scalar_select %p164, %s10, 1
        %s166 = smul.addr %s165, 2
        %s167 = smul.addr %s166, 4
        %s168 = scalar_lea.vmem %s3, %s167
      $region32: #{feature_wise_affine.1} parent=23 // pred_fallthru
        _
    $region24: #{feature_wise_affine.1} parent=5 // pred_fallthru
      _
    %p169 = scmp.le.s32.totalorder 1, %s10
    %p170 = scmp.lt.s32.totalorder %s10, 3
    %p171 = pnand %p169, %p170
    %p172 = pneg %p171
    // Predicated region
    $region33: #{feature_wise_affine.1} parent=5 // pred_check
      _
    $region34: #{feature_wise_affine.1} parent=5 // pred_check_branch
      %174 = sbr.rel (%p171) target = $region36
    $region35: #{feature_wise_affine.1} parent=5 // pred_region
      %s175 = ssub.s32 %s10, 1
      %p176 = scmp.lt.s32.totalorder %s15, 1
      %s177 = scalar_select %p176, %s15, 1
      %s178 = scalar_lea.vmem %s0, %s177
      %p179 = pneg %p36
      %p180 = pneg %p33
      %p181 = pneg %p57
      %p182 = pneg %p54
      %p183 = pneg %p78
      %p184 = pneg %p75
      %p185 = scmp.lt.s32.totalorder %s15, 1
      %s186 = scalar_select %p185, %s15, 1
      %s187 = smul.addr %s186, 2
      %s188 = smul.addr %s187, 4
      %s189 = scalar_lea.vmem %s3, %s188
      %p190 = pneg %p104
      %p191 = pneg %p101
      %p192 = pneg %p130
      %p193 = pneg %p127
      %p194 = scmp.lt.s32.totalorder %s15, 1
      %s195 = scalar_select %p194, %s15, 1
      %s196 = smul.addr %s195, 2
      %s197 = smul.addr %s196, 4
      %s198 = scalar_lea.vmem %s4, %s197
      %p199 = scmp.lt.s32.totalorder %s15, 1
      %s200 = scalar_select %p199, %s15, 1
      %s201 = scalar_lea.vmem %s0, %s200
      %p202 = scmp.lt.s32.totalorder %s15, 1
      %s203 = scalar_select %p202, %s15, 1
      %s204 = smul.addr %s203, 2
      %s205 = smul.addr %s204, 4
      %s206 = scalar_lea.vmem %s3, %s205
      %p207 = scmp.lt.s32.totalorder %s15, 1
      %s208 = scalar_select %p207, %s15, 1
      %s209 = smul.addr %s208, 2
      %s210 = smul.addr %s209, 4
      %s211 = scalar_lea.vmem %s4, %s210
      %v212 = vld [vmem:[%s1] sm:$0xf]
      %v213 = vld [vmem:[%s201] sm:$0x1]
      %v215 = vlaneseq
      %v216 = vshrl.u32 %v215, 7
      %v217 = vsub.s32 0, %v216
      %v218 = vrot.slane %v213, %v217
      %v220 = vmul.f32 %v212, %v218
      %vm221 = vcmask 257024
      %v222 = vsel %vm221, %v220, 0.0
      %223 = vadd.xlane.f32.xlu0 %v222
      %v224 = vpop.xlane.xlu0 %223
      %v225 = vld [vmem:[%s2] sm:$0xf]
      %v226 = vadd.f32 %v224, %v225
      %v227 = vld [vmem:[%s206] sm:$0xff]
      %229 = vset.pattern.permute.xlu0 0
      %230 = vperm.xlu0 %229, %v226
      %v231 = vpop.permute.xlu0 %230
      %v233 = vunpack.c.l.s4 839922192
      %v234 = vunpack.c.0.s8 %v233
      %v235 = vlaneseq
      %v236 = vshrl.u32 %v235, 7
      %v237 = vsub.s32 %v234, %v236
      %v238 = vrot.slane %v231, %v237
      %v240 = vadd.f32 %v227, %v238
      %241 = vst [vmem:[%s211] sm:$0xff] %v240
      %p242 = scmp.lt.s32.totalorder %s15, 1
      %s243 = scalar_select %p242, %s15, 1
      %s244 = smul.addr %s243, 2
      %s245 = smul.addr %s244, 4
      %s246 = scalar_lea.vmem %s4, %s245
      // Predicated region
      $region37: #{feature_wise_affine.1} parent=35 // pred_check
        %p247 = pneg %p127
      $region38: #{feature_wise_affine.1} parent=35 // pred_check_branch
        %249 = sbr.rel (%p247) target = $region40
      $region39: #{feature_wise_affine.1} parent=35 // pred_region
        _
      $region40: #{feature_wise_affine.1} parent=35 // pred_fallthru
        _
    $region36: #{feature_wise_affine.1} parent=5 // pred_fallthru
      _
    %p250 = scmp.le.s32.totalorder 2, %s10
    // Predicated region
    $region41: #{feature_wise_affine.1} parent=5 // pred_check
      %p251 = pneg %p250
    $region42: #{feature_wise_affine.1} parent=5 // pred_check_branch
      %253 = sbr.rel (%p251) target = $region44
    $region43: #{feature_wise_affine.1} parent=5 // pred_region
      %s254 = ssub.s32 %s10, 2
      // Predicated region
      $region45: #{feature_wise_affine.1} parent=43 // pred_check
        %p255 = pneg %p133
      $region46: #{feature_wise_affine.1} parent=43 // pred_check_branch
        %257 = sbr.rel (%p255) target = $region48
      $region47: #{feature_wise_affine.1} parent=43 // pred_region
        %p258 = scmp.lt.s32.totalorder %s16, 1
        %s259 = scalar_select %p258, %s16, 1
        %s260 = smul.addr %s259, 2
        %s261 = smul.addr %s260, 4
        %s262 = scalar_lea.vmem %s4, %s261
      $region48: #{feature_wise_affine.1} parent=43 // pred_fallthru
        _
    $region44: #{feature_wise_affine.1} parent=5 // pred_fallthru
      _
  $region6: #{feature_wise_affine.1} parent=0 // loop_footer
    %s14 = sadd.s32 1, %s10
  $region7: #{feature_wise_affine.1} parent=0 // loop_footer_branch
    %9 = sbr.rel target = $region3
  $region8: #{feature_wise_affine.1} parent=0 // loop_exit
    _

</llo_original>
